<compile_context>
chip_gen: v7x
topology: tpu7x:2x2x1
jax: 0.10.0
libtpu: 0.0.40
codegen_flags: <defaults>
</compile_context>

<pallas_src>
import functools
import numpy as np

import jax
import jax.numpy as jnp
from jax.experimental import pallas as pl
from jax.experimental.pallas import tpu as pltpu

# ----------------------------- configuration ------------------------------
NFEATS      = 8        # per-person motion feature dim (x1 last dim = 2 * NFEATS)
LATENT_DIM  = 32
FF_SIZE     = 64
TEXT_DIM    = 16       # == denoiser1.text_dim == denoiser2.text_dim
N_BLOCKS    = 2        # (unused by simplified Influence)
N_HEADS     = 2        # (unused by simplified Influence)
MIXING_MODE = 1
MODE        = "train"
MAX_LEN     = 1024     # positional-encoding table length (covers timesteps too)

B, T = 2, 8

# ----------------- packed-operand layout (wrapper <-> kernel) ---------------
# Data slab X: (4*B*T, 128).  Columns = contraction (K) axis of the fused matmul:
_K_M1  = 0                              # x1 person-stack features (rows [0, 2BT))
_K_M2  = NFEATS                         # x2 person-stack features (rows [2BT, 4BT))
_K_TS  = 2 * NFEATS                     # pe[timesteps] duplicated for i1/i2 (rows [0, 2B))
_K_TXT = 2 * NFEATS + LATENT_DIM        # cond_I + cond_i{1,2}        (rows [0, 2B))
_K_TOT = _K_TXT + TEXT_DIM              # = 64 used columns; the rest stay zero

# Fused-matmul output (N) column blocks:
_N_TS  = 0                              # TimestepEmbedder layer-1 pre-activation
_N_TXT = LATENT_DIM                     # text embedding (its bias folded downstream)
_N_EMB = 2 * LATENT_DIM                 # motion embedding (normalizer std folded in)

# Parameter slab P: (200, 128) f32, static row offsets:
_R_WBIG  = 0      # [0, 128)  fused weight (K x 128); rows >= _K_TOT are zero
_R_TSW2  = 128    # [128,160) 2 * ts_W2  (factor 2 bakes in the cond_I + cond_i* sum)
_R_INFW1 = 160    # [160,192) influence MLP layer-1 weight
_R_TSB1  = 192    # ts_b1
_R_BPOOL = 193    # constant bias folded into the pooled influence input
_R_INFB1 = 194    # influence MLP layer-1 bias
_R_INFW2 = 195    # influence MLP layer-2 weight (stored as one lane row)
_R_INFB2 = 196    # influence MLP layer-2 bias (scalar at lane 0)
_R_NORM  = 197    # [n1_std | n1_mean | n2_std | n2_mean], NFEATS lanes each
_P_ROWS  = 200

_VMEM = pl.BlockSpec(memory_space=pltpu.MemorySpace.VMEM)


# ------------------------------ kernel helpers ------------------------------
def _sigmoid(x):
    # exact sigmoid (review flagged approx-reciprocal tolerance); exp runs on the EUP
    return 1.0 / (1.0 + jnp.exp(-x))


def _silu(x):
    return x * _sigmoid(x)


# ------------------------------ fused kernel --------------------------------
def _mixer_fused_kernel(x_ref, p_ref, o_ref, *, b, t, f):
    f32 = jnp.float32
    L = LATENT_DIM
    bt, two_b, two_bt = b * t, 2 * b, 2 * b * t

    x = x_ref[...]                                                     # (4bt, 128)

    # --- ONE fused MXU push: motion_embed (norm std folded), ts layer-1, text_embed.
    #     X columns >= _K_TOT are zero, so the zero weight rows there contribute nothing.
    r = jnp.dot(x, p_ref[_R_WBIG:_R_WBIG + 128, :],
                preferred_element_type=f32)                            # (4bt, 128)

    emb  = r[:, _N_EMB:_N_EMB + L]                                     # (4bt, L)
    ts_h = r[0:two_b, _N_TS:_N_TS + L] + p_ref[_R_TSB1:_R_TSB1 + 1, 0:L]
    txt  = r[0:two_b, _N_TXT:_N_TXT + L]                               # bias folded below

    # --- TimestepEmbedder layer 2 (x2 scale and 2*ts_b2 pre-folded by the packer).
    ts2 = jnp.dot(_silu(ts_h), p_ref[_R_TSW2:_R_TSW2 + L, 0:L],
                  preferred_element_type=f32)                          # (2b, L)

    # --- time pooling of (e1 + e2) per influence branch: reshape + sublane mean
    #     (VPU/XLU only; the old pool2 0/1-matrix matmul is gone).
    pooled4 = jnp.mean(emb.reshape(4 * b, t, L), axis=1)               # (4b, L)
    pooled = (pooled4[0:two_b] + pooled4[two_b:4 * b]
              + txt + ts2 + p_ref[_R_BPOOL:_R_BPOOL + 1, 0:L])         # (2b, L)

    # --- simplified Influence head: latent -> ff (MXU) -> 1 (lane reduce) -> sigmoid.
    h = _silu(jnp.dot(pooled, p_ref[_R_INFW1:_R_INFW1 + L, 0:FF_SIZE],
                      preferred_element_type=f32)
              + p_ref[_R_INFB1:_R_INFB1 + 1, 0:FF_SIZE])               # (2b, ff)
    y = (jnp.sum(h * p_ref[_R_INFW2:_R_INFW2 + 1, 0:FF_SIZE],
                 axis=-1, keepdims=True)
         + p_ref[_R_INFB2:_R_INFB2 + 1, 0:1])
    inf = _sigmoid(y)                                                  # (2b, 1): [i1 ; i2]

    # --- identity denoisers + normalizer .backward(): x * std + mean.
    nrm = p_ref[_R_NORM:_R_NORM + 1, :]
    out1 = x[0:two_bt, _K_M1:_K_M1 + f] * nrm[:, 0:f] + nrm[:, f:2 * f]          # (2bt, f)
    out2 = (x[two_bt:4 * bt, _K_M2:_K_M2 + f] * nrm[:, 2 * f:3 * f]
            + nrm[:, 3 * f:4 * f])                                               # (2bt, f)

    # --- mixing_mode == 1: broadcast the per-(batch, person) influence over time
    #     in-register (sublane broadcast; the old rep 0/1-matrix matmul is gone).
    inf_rows = jnp.broadcast_to(inf[:, None, :], (two_b, t, f)).reshape(two_bt, f)
    mixed = out2 + inf_rows * (out1 - out2)                            # (2bt, f)

    # --- packed output via direct static-slice stores (no in-kernel lane concat).
    o_ref[:, 0 * f:1 * f] = mixed[0:bt]
    o_ref[:, 1 * f:2 * f] = mixed[bt:two_bt]
    o_ref[:, 2 * f:3 * f] = out1[0:bt]
    o_ref[:, 3 * f:4 * f] = out1[bt:two_bt]
    o_ref[:, 4 * f:5 * f] = out2[0:bt]
    o_ref[:, 5 * f:6 * f] = out2[bt:two_bt]


# ------------------------------ parameters ---------------------------------
def sinusoidal_pe(max_len, d_model):
    position = np.arange(max_len, dtype=np.float32)[:, None]
    div_term = np.exp(np.arange(0, d_model, 2, dtype=np.float32)
                      * (-np.log(10000.0) / d_model))
    pe = np.zeros((max_len, d_model), dtype=np.float32)
    pe[:, 0::2] = np.sin(position * div_term)
    pe[:, 1::2] = np.cos(position * div_term)
    return jnp.asarray(pe)


def make_params(key):
    ks = jax.random.split(key, 16)

    def lin(k, i, o, scale=0.05):
        return (jax.random.normal(k, (i, o), jnp.float32) * scale).astype(jnp.float32)

    def vec(k, n, scale=0.02):
        return (jax.random.normal(k, (n,), jnp.float32) * scale).astype(jnp.float32)

    return dict(
        # nn.Linear(text_dim, latent_dim)
        W_text=lin(ks[0], TEXT_DIM, LATENT_DIM), b_text=vec(ks[1], LATENT_DIM),
        # nn.Linear(nfeats, latent_dim)
        W_motion=lin(ks[2], NFEATS, LATENT_DIM), b_motion=vec(ks[3], LATENT_DIM),
        # TimestepEmbedder MLP (latent -> latent -> latent)
        ts_W1=lin(ks[4], LATENT_DIM, LATENT_DIM), ts_b1=vec(ks[5], LATENT_DIM),
        ts_W2=lin(ks[6], LATENT_DIM, LATENT_DIM), ts_b2=vec(ks[7], LATENT_DIM),
        # simplified Influence head (latent -> ff -> 1)
        inf_W1=lin(ks[8], LATENT_DIM, FF_SIZE), inf_b1=vec(ks[9], FF_SIZE),
        inf_W2=lin(ks[10], FF_SIZE, 1), inf_b2=vec(ks[11], 1),
        # normalizer .backward(): x * std + mean
        norm1_mean=vec(ks[12], NFEATS, 0.1),
        norm1_std=jnp.abs(jax.random.normal(ks[13], (NFEATS,))) * 0.5 + 1.0,
        norm2_mean=vec(ks[14], NFEATS, 0.1),
        norm2_std=jnp.abs(jax.random.normal(ks[15], (NFEATS,))) * 0.5 + 1.0,
        pe=sinusoidal_pe(MAX_LEN, LATENT_DIM),
    )


def pack_param_slab(params, t):
    """Pre-fold and pack every weight / bias / constant into one (200,128) slab:
    exactly one parameter DMA per launch, static row offsets inside the kernel."""
    L, F, TD, FF = LATENT_DIM, NFEATS, TEXT_DIM, FF_SIZE
    w_motion = params["W_motion"]
    # Everything additive that ends up in the pooled influence input is constant:
    #   (n1_mean + n2_mean) @ W_motion + 2*b_motion + 2*mean_t(pe) + 2*b_text + 2*ts_b2
    bias_pool = ((params["norm1_mean"] + params["norm2_mean"]) @ w_motion
                 + 2.0 * params["b_motion"]
                 + 2.0 * jnp.mean(params["pe"][:t], axis=0)
                 + 2.0 * params["b_text"]
                 + 2.0 * params["ts_b2"])

    p = jnp.zeros((_P_ROWS, 128), jnp.float32)
    # Fused matmul weight (rows = K, cols = N), block-diagonal structure.
    # Normalizer std folded into the embedding-path weights by linearity.
    p = p.at[_K_M1:_K_M1 + F, _N_EMB:_N_EMB + L].set(params["norm1_std"][:, None] * w_motion)
    p = p.at[_K_M2:_K_M2 + F, _N_EMB:_N_EMB + L].set(params["norm2_std"][:, None] * w_motion)
    p = p.at[_K_TS:_K_TS + L, _N_TS:_N_TS + L].set(params["ts_W1"])
    p = p.at[_K_TXT:_K_TXT + TD, _N_TXT:_N_TXT + L].set(params["W_text"])
    # Remaining parameter blocks and bias rows.
    p = p.at[_R_TSW2:_R_TSW2 + L, 0:L].set(2.0 * params["ts_W2"])
    p = p.at[_R_INFW1:_R_INFW1 + L, 0:FF].set(params["inf_W1"])
    p = p.at[_R_TSB1, 0:L].set(params["ts_b1"])
    p = p.at[_R_BPOOL, 0:L].set(bias_pool)
    p = p.at[_R_INFB1, 0:FF].set(params["inf_b1"])
    p = p.at[_R_INFW2, 0:FF].set(params["inf_W2"][:, 0])
    p = p.at[_R_INFB2, 0].set(params["inf_b2"][0])
    p = p.at[_R_NORM, 0:F].set(params["norm1_std"])
    p = p.at[_R_NORM, F:2 * F].set(params["norm1_mean"])
    p = p.at[_R_NORM, 2 * F:3 * F].set(params["norm2_std"])
    p = p.at[_R_NORM, 3 * F:4 * F].set(params["norm2_mean"])
    return p


# ------------------------------ forward pass --------------------------------
def mixer_forward(param_slab, pe, x1, timesteps, cond, mask, x2):
    # TODO(synk): denoiser1/denoiser2 are external nn.Modules -> identity stand-ins;
    #             cond[:, :3*td], cond[:, 3*td:5*td] and `mask` are only consumed there
    #             (and by the Influence attention / align=True path), so unused here.
    b, t = x1.shape[:2]
    bt = b * t
    f = NFEATS
    td = TEXT_DIM

    x1 = x1.astype(jnp.float32).reshape(bt, 2 * f)
    x2 = x2.astype(jnp.float32).reshape(bt, 2 * f)
    x1_stack = jnp.concatenate([x1[:, :f], x1[:, f:]], axis=0)        # (2bt, f): [p1 ; p2]
    x2_stack = jnp.concatenate([x2[:, :f], x2[:, f:]], axis=0)

    cond = cond.astype(jnp.float32)
    cond_I  = cond[:, 5 * td:6 * td]
    cond_i1 = cond[:, 6 * td:7 * td]
    cond_i2 = cond[:, 7 * td:8 * td]
    # text_embed(cond_I) + text_embed(cond_i*) == text_embed(cond_I + cond_i*) plus a
    # doubled bias (linearity); the bias is folded into the packed bias_pool row.
    cond_pair = jnp.concatenate([cond_I + cond_i1, cond_I + cond_i2], axis=0)   # (2b, td)

    ts_pe = jnp.take(pe, timesteps, axis=0)                           # (b, L) tiny gather
    ts_pe2 = jnp.concatenate([ts_pe, ts_pe], axis=0)                  # (2b, L)

    # Single lane-dense data slab (one input DMA); the column layout matches the fused
    # weight's contraction blocks and unused columns stay exactly zero.
    xslab = jnp.zeros((4 * bt, 128), jnp.float32)
    xslab = xslab.at[0:2 * bt, _K_M1:_K_M1 + f].set(x1_stack)
    xslab = xslab.at[2 * bt:4 * bt, _K_M2:_K_M2 + f].set(x2_stack)
    xslab = xslab.at[0:2 * b, _K_TS:_K_TS + LATENT_DIM].set(ts_pe2)
    xslab = xslab.at[0:2 * b, _K_TXT:_K_TXT + td].set(cond_pair)

    packed_out = pl.pallas_call(
        functools.partial(_mixer_fused_kernel, b=b, t=t, f=f),
        out_shape=jax.ShapeDtypeStruct((bt, 6 * f), jnp.float32),
        in_specs=[_VMEM, _VMEM],
        out_specs=_VMEM,
        cost_estimate=pl.CostEstimate(flops=2_200_000, transcendentals=512,
                                      bytes_accessed=140_000),
    )(xslab, param_slab)

    out_influenced = packed_out[:, 0:2 * f].reshape(b, t, 2 * f)
    out1 = packed_out[:, 2 * f:4 * f].reshape(b, t, 2 * f)
    out2 = packed_out[:, 4 * f:6 * f].reshape(b, t, 2 * f)
    # mode == 'train'
    return out_influenced, out1, out2


# --------------------------------- driver -----------------------------------
if __name__ == "__main__":
    key = jax.random.PRNGKey(0)
    k_p, k_x1, k_x2, k_c, k_t = jax.random.split(key, 5)

    params = make_params(k_p)
    param_slab = pack_param_slab(params, T)     # packed once, reused for every call

    x1 = jax.random.normal(k_x1, (B, T, 2 * NFEATS), jnp.float32)
    x2 = jax.random.normal(k_x2, (B, T, 2 * NFEATS), jnp.float32)
    cond = jax.random.normal(k_c, (B, 8 * TEXT_DIM), jnp.float32)     # (B, 128)
    timesteps = jax.random.randint(k_t, (B,), 0, 1000, jnp.int32)
    mask = jnp.ones((B, T), dtype=bool)

    fwd = jax.jit(mixer_forward)
    out_influenced, out1, out2 = fwd(param_slab, params["pe"], x1, timesteps,
                                     cond, mask, x2)
    jax.block_until_ready((out_influenced, out1, out2))

    assert out_influenced.shape == (B, T, 2 * NFEATS)
    assert out1.shape == (B, T, 2 * NFEATS)
    assert out2.shape == (B, T, 2 * NFEATS)
    assert bool(jnp.all(jnp.isfinite(out_influenced)))
    assert bool(jnp.all(jnp.isfinite(out1)))
    assert bool(jnp.all(jnp.isfinite(out2)))

    print("KERNEL_OK")
</pallas_src>

<mosaic_0001>
module attributes {stable_mosaic.version = 11 : i64} {
  func.func @_mixer_fused_kernel(%arg0: memref<64x128xf32, #tpu.memory_space<vmem>>, %arg1: memref<200x128xf32, #tpu.memory_space<vmem>>, %arg2: memref<16x48xf32, #tpu.memory_space<vmem>>) attributes {dimension_semantics = [], scalar_prefetch = 0 : i64, scratch_operands = 0 : i64, tpu.core_type = #tpu.core_type<tc>} {
    %c0 = arith.constant 0 : index
    %c0_0 = arith.constant 0 : index
    %0 = vector.load %arg0[%c0, %c0_0] : memref<64x128xf32, #tpu.memory_space<vmem>>, vector<64x128xf32>
    %c0_1 = arith.constant 0 : index
    %c0_2 = arith.constant 0 : index
    %1 = vector.load %arg1[%c0_1, %c0_2] : memref<200x128xf32, #tpu.memory_space<vmem>>, vector<128x128xf32>
    %cst = arith.constant dense<0.000000e+00> : vector<64x128xf32>
    %2 = tpu.matmul %0, %1, %cst {dimension_numbers = #tpu.dot_dimension_numbers<[1], [0], [0], [1], [0, 0, 1, 1], [], []>} : vector<64x128xf32>, vector<128x128xf32>, vector<64x128xf32> -> vector<64x128xf32>
    %3 = vector.extract_strided_slice %2 {offsets = [0, 64], sizes = [64, 32], strides = [1, 1]} : vector<64x128xf32> to vector<64x32xf32>
    %4 = vector.extract_strided_slice %2 {offsets = [0, 0], sizes = [4, 32], strides = [1, 1]} : vector<64x128xf32> to vector<4x32xf32>
    %c192 = arith.constant 192 : index
    %c0_3 = arith.constant 0 : index
    %5 = vector.load %arg1[%c192, %c0_3] : memref<200x128xf32, #tpu.memory_space<vmem>>, vector<1x32xf32>
    %6 = vector.broadcast %5 : vector<1x32xf32> to vector<4x32xf32>
    %7 = arith.addf %4, %6 : vector<4x32xf32>
    %8 = vector.extract_strided_slice %2 {offsets = [0, 32], sizes = [4, 32], strides = [1, 1]} : vector<64x128xf32> to vector<4x32xf32>
    %cst_4 = arith.constant 0.000000e+00 : f32
    %9 = vector.broadcast %cst_4 : f32 to vector<4x32xf32>
    %10 = arith.subf %9, %7 : vector<4x32xf32>
    %11 = math.exp %10 : vector<4x32xf32>
    %cst_5 = arith.constant 1.000000e+00 : f32
    %12 = vector.broadcast %cst_5 : f32 to vector<4x32xf32>
    %13 = arith.addf %12, %11 : vector<4x32xf32>
    %cst_6 = arith.constant 1.000000e+00 : f32
    %14 = vector.broadcast %cst_6 : f32 to vector<4x32xf32>
    %15 = arith.divf %14, %13 : vector<4x32xf32>
    %16 = arith.mulf %7, %15 : vector<4x32xf32>
    %c128 = arith.constant 128 : index
    %c0_7 = arith.constant 0 : index
    %17 = vector.load %arg1[%c128, %c0_7] : memref<200x128xf32, #tpu.memory_space<vmem>>, vector<32x32xf32>
    %cst_8 = arith.constant dense<0.000000e+00> : vector<4x32xf32>
    %18 = tpu.matmul %16, %17, %cst_8 {dimension_numbers = #tpu.dot_dimension_numbers<[1], [0], [0], [1], [0, 0, 1, 1], [], []>} : vector<4x32xf32>, vector<32x32xf32>, vector<4x32xf32> -> vector<4x32xf32>
    %19 = vector.shape_cast %3 : vector<64x32xf32> to vector<8x8x32xf32>
    %cst_9 = arith.constant dense<0.000000e+00> : vector<8x32xf32>
    %20 = vector.multi_reduction <add>, %19, %cst_9 [1] : vector<8x8x32xf32> to vector<8x32xf32>
    %cst_10 = arith.constant 8.000000e+00 : f32
    %21 = vector.broadcast %cst_10 : f32 to vector<8x32xf32>
    %22 = arith.divf %20, %21 : vector<8x32xf32>
    %23 = vector.extract_strided_slice %22 {offsets = [0, 0], sizes = [4, 32], strides = [1, 1]} : vector<8x32xf32> to vector<4x32xf32>
    %24 = vector.extract_strided_slice %22 {offsets = [4, 0], sizes = [4, 32], strides = [1, 1]} : vector<8x32xf32> to vector<4x32xf32>
    %25 = arith.addf %23, %24 : vector<4x32xf32>
    %26 = arith.addf %25, %8 : vector<4x32xf32>
    %27 = arith.addf %26, %18 : vector<4x32xf32>
    %c193 = arith.constant 193 : index
    %c0_11 = arith.constant 0 : index
    %28 = vector.load %arg1[%c193, %c0_11] : memref<200x128xf32, #tpu.memory_space<vmem>>, vector<1x32xf32>
    %29 = vector.broadcast %28 : vector<1x32xf32> to vector<4x32xf32>
    %30 = arith.addf %27, %29 : vector<4x32xf32>
    %c160 = arith.constant 160 : index
    %c0_12 = arith.constant 0 : index
    %31 = vector.load %arg1[%c160, %c0_12] : memref<200x128xf32, #tpu.memory_space<vmem>>, vector<32x64xf32>
    %cst_13 = arith.constant dense<0.000000e+00> : vector<4x64xf32>
    %32 = tpu.matmul %30, %31, %cst_13 {dimension_numbers = #tpu.dot_dimension_numbers<[1], [0], [0], [1], [0, 0, 1, 1], [], []>} : vector<4x32xf32>, vector<32x64xf32>, vector<4x64xf32> -> vector<4x64xf32>
    %c194 = arith.constant 194 : index
    %c0_14 = arith.constant 0 : index
    %33 = vector.load %arg1[%c194, %c0_14] : memref<200x128xf32, #tpu.memory_space<vmem>>, vector<1x64xf32>
    %34 = vector.broadcast %33 : vector<1x64xf32> to vector<4x64xf32>
    %35 = arith.addf %32, %34 : vector<4x64xf32>
    %cst_15 = arith.constant 0.000000e+00 : f32
    %36 = vector.broadcast %cst_15 : f32 to vector<4x64xf32>
    %37 = arith.subf %36, %35 : vector<4x64xf32>
    %38 = math.exp %37 : vector<4x64xf32>
    %cst_16 = arith.constant 1.000000e+00 : f32
    %39 = vector.broadcast %cst_16 : f32 to vector<4x64xf32>
    %40 = arith.addf %39, %38 : vector<4x64xf32>
    %cst_17 = arith.constant 1.000000e+00 : f32
    %41 = vector.broadcast %cst_17 : f32 to vector<4x64xf32>
    %42 = arith.divf %41, %40 : vector<4x64xf32>
    %43 = arith.mulf %35, %42 : vector<4x64xf32>
    %c195 = arith.constant 195 : index
    %c0_18 = arith.constant 0 : index
    %44 = vector.load %arg1[%c195, %c0_18] : memref<200x128xf32, #tpu.memory_space<vmem>>, vector<1x64xf32>
    %45 = vector.broadcast %44 : vector<1x64xf32> to vector<4x64xf32>
    %46 = arith.mulf %43, %45 : vector<4x64xf32>
    %cst_19 = arith.constant dense<0.000000e+00> : vector<4xf32>
    %47 = vector.multi_reduction <add>, %46, %cst_19 [1] : vector<4x64xf32> to vector<4xf32>
    %48 = vector.shape_cast %47 : vector<4xf32> to vector<4x1xf32>
    %c196 = arith.constant 196 : index
    %c0_20 = arith.constant 0 : index
    %49 = vector.load %arg1[%c196, %c0_20] : memref<200x128xf32, #tpu.memory_space<vmem>>, vector<1x1xf32>
    %50 = vector.broadcast %49 : vector<1x1xf32> to vector<4x1xf32>
    %51 = arith.addf %48, %50 : vector<4x1xf32>
    %cst_21 = arith.constant 0.000000e+00 : f32
    %52 = vector.broadcast %cst_21 : f32 to vector<4x1xf32>
    %53 = arith.subf %52, %51 : vector<4x1xf32>
    %54 = math.exp %53 : vector<4x1xf32>
    %cst_22 = arith.constant 1.000000e+00 : f32
    %55 = vector.broadcast %cst_22 : f32 to vector<4x1xf32>
    %56 = arith.addf %55, %54 : vector<4x1xf32>
    %cst_23 = arith.constant 1.000000e+00 : f32
    %57 = vector.broadcast %cst_23 : f32 to vector<4x1xf32>
    %58 = arith.divf %57, %56 : vector<4x1xf32>
    %c197 = arith.constant 197 : index
    %c0_24 = arith.constant 0 : index
    %59 = vector.load %arg1[%c197, %c0_24] : memref<200x128xf32, #tpu.memory_space<vmem>>, vector<1x128xf32>
    %60 = vector.extract_strided_slice %0 {offsets = [0, 0], sizes = [32, 8], strides = [1, 1]} : vector<64x128xf32> to vector<32x8xf32>
    %61 = vector.extract_strided_slice %59 {offsets = [0, 0], sizes = [1, 8], strides = [1, 1]} : vector<1x128xf32> to vector<1x8xf32>
    %62 = vector.broadcast %61 : vector<1x8xf32> to vector<32x8xf32>
    %63 = arith.mulf %60, %62 : vector<32x8xf32>
    %64 = vector.extract_strided_slice %59 {offsets = [0, 8], sizes = [1, 8], strides = [1, 1]} : vector<1x128xf32> to vector<1x8xf32>
    %65 = vector.broadcast %64 : vector<1x8xf32> to vector<32x8xf32>
    %66 = arith.addf %63, %65 : vector<32x8xf32>
    %67 = vector.extract_strided_slice %0 {offsets = [32, 8], sizes = [32, 8], strides = [1, 1]} : vector<64x128xf32> to vector<32x8xf32>
    %68 = vector.extract_strided_slice %59 {offsets = [0, 16], sizes = [1, 8], strides = [1, 1]} : vector<1x128xf32> to vector<1x8xf32>
    %69 = vector.broadcast %68 : vector<1x8xf32> to vector<32x8xf32>
    %70 = arith.mulf %67, %69 : vector<32x8xf32>
    %71 = vector.extract_strided_slice %59 {offsets = [0, 24], sizes = [1, 8], strides = [1, 1]} : vector<1x128xf32> to vector<1x8xf32>
    %72 = vector.broadcast %71 : vector<1x8xf32> to vector<32x8xf32>
    %73 = arith.addf %70, %72 : vector<32x8xf32>
    %74 = vector.shape_cast %58 : vector<4x1xf32> to vector<4x1x1xf32>
    %75 = vector.shape_cast %74 : vector<4x1x1xf32> to vector<4x1x1xf32>
    %76 = vector.broadcast %75 : vector<4x1x1xf32> to vector<4x8x8xf32>
    %77 = vector.shape_cast %76 : vector<4x8x8xf32> to vector<32x8xf32>
    %78 = arith.subf %66, %73 : vector<32x8xf32>
    %79 = arith.mulf %77, %78 : vector<32x8xf32>
    %80 = arith.addf %73, %79 : vector<32x8xf32>
    %81 = vector.extract_strided_slice %80 {offsets = [0, 0], sizes = [16, 8], strides = [1, 1]} : vector<32x8xf32> to vector<16x8xf32>
    %c0_25 = arith.constant 0 : index
    %c0_26 = arith.constant 0 : index
    %82 = vector.load %arg2[%c0_25, %c0_26] : memref<16x48xf32, #tpu.memory_space<vmem>>, vector<16x8xf32>
    tpu.vector_store %arg2[%c0_25, %c0_26], %81 {strides = array<i32>} : memref<16x48xf32, #tpu.memory_space<vmem>>, vector<16x8xf32>,
    %83 = vector.extract_strided_slice %80 {offsets = [16, 0], sizes = [16, 8], strides = [1, 1]} : vector<32x8xf32> to vector<16x8xf32>
    %c0_27 = arith.constant 0 : index
    %c8 = arith.constant 8 : index
    %84 = vector.load %arg2[%c0_27, %c8] : memref<16x48xf32, #tpu.memory_space<vmem>>, vector<16x8xf32>
    tpu.vector_store %arg2[%c0_27, %c8], %83 {strides = array<i32>} : memref<16x48xf32, #tpu.memory_space<vmem>>, vector<16x8xf32>,
    %85 = vector.extract_strided_slice %66 {offsets = [0, 0], sizes = [16, 8], strides = [1, 1]} : vector<32x8xf32> to vector<16x8xf32>
    %c0_28 = arith.constant 0 : index
    %c16 = arith.constant 16 : index
    %86 = vector.load %arg2[%c0_28, %c16] : memref<16x48xf32, #tpu.memory_space<vmem>>, vector<16x8xf32>
    tpu.vector_store %arg2[%c0_28, %c16], %85 {strides = array<i32>} : memref<16x48xf32, #tpu.memory_space<vmem>>, vector<16x8xf32>,
    %87 = vector.extract_strided_slice %66 {offsets = [16, 0], sizes = [16, 8], strides = [1, 1]} : vector<32x8xf32> to vector<16x8xf32>
    %c0_29 = arith.constant 0 : index
    %c24 = arith.constant 24 : index
    %88 = vector.load %arg2[%c0_29, %c24] : memref<16x48xf32, #tpu.memory_space<vmem>>, vector<16x8xf32>
    tpu.vector_store %arg2[%c0_29, %c24], %87 {strides = array<i32>} : memref<16x48xf32, #tpu.memory_space<vmem>>, vector<16x8xf32>,
    %89 = vector.extract_strided_slice %73 {offsets = [0, 0], sizes = [16, 8], strides = [1, 1]} : vector<32x8xf32> to vector<16x8xf32>
    %c0_30 = arith.constant 0 : index
    %c32 = arith.constant 32 : index
    %90 = vector.load %arg2[%c0_30, %c32] : memref<16x48xf32, #tpu.memory_space<vmem>>, vector<16x8xf32>
    tpu.vector_store %arg2[%c0_30, %c32], %89 {strides = array<i32>} : memref<16x48xf32, #tpu.memory_space<vmem>>, vector<16x8xf32>,
    %91 = vector.extract_strided_slice %73 {offsets = [16, 0], sizes = [16, 8], strides = [1, 1]} : vector<32x8xf32> to vector<16x8xf32>
    %c0_31 = arith.constant 0 : index
    %c40 = arith.constant 40 : index
    %92 = vector.load %arg2[%c0_31, %c40] : memref<16x48xf32, #tpu.memory_space<vmem>>, vector<16x8xf32>
    tpu.vector_store %arg2[%c0_31, %c40], %91 {strides = array<i32>} : memref<16x48xf32, #tpu.memory_space<vmem>>, vector<16x8xf32>,
    return
  }
}

</mosaic_0001>

<llo_original>
// kernel: mixer_forward.1
$region0: #{mixer_forward.1}
  #allocation0 [shape = 'u32[]', space=smem, size = 0x4, offset = 0x4, fixed_abs, tag = 'smem constant byte address 0x4 - core index']
  #allocation1 [shape = 'u32[144,128]{1,0:T(1,128)}', space=vmem, size = 0x12000, scoped, tag = 'internal scratch']
  %s0 = inlined_call_operand.vmem [shape: f32[64,128], index: 0, kind: input, shape index: {}]
  %s1 = inlined_call_operand.vmem [shape: f32[200,128], index: 1, kind: input, shape index: {}]
  %s2 = inlined_call_operand.vmem [shape: f32[16,48], index: 2, kind: output, shape index: {}]
  %s3 = sld [smem:[#allocation0]]
  $region18: #{mixer_forward.1} parent=0
    _
  %s5 = ssub.s32 1, %s3
  %s6 = scalar_select 0, %s5, %s3
  // Predicated region
  $region2: #{mixer_forward.1} parent=0 // pred_check
    _
  $region3: #{mixer_forward.1} parent=0 // pred_check_branch
    %8 = sbr.rel (0) target = $region5
  $region4: #{mixer_forward.1} parent=0 // pred_region
    _
  $region5: #{mixer_forward.1} parent=0 // pred_fallthru
    _
  // Predicated region
  $region6: #{mixer_forward.1} parent=0 // pred_check
    _
  $region7: #{mixer_forward.1} parent=0 // pred_check_branch
    %10 = sbr.rel (0) target = $region9
  $region8: #{mixer_forward.1} parent=0 // pred_region
    _
  $region9: #{mixer_forward.1} parent=0 // pred_fallthru
    _
  %v11 = vld [vmem:[%s0] sm:$0xff]
  %v12 = vld [vmem:[%s0 + $0x8] sm:$0xff]
  %v13 = vld [vmem:[%s0 + $0x10] sm:$0xff]
  %v14 = vld [vmem:[%s0 + $0x18] sm:$0xff]
  %v15 = vld [vmem:[%s0 + $0x20] sm:$0xff]
  %v16 = vld [vmem:[%s0 + $0x28] sm:$0xff]
  %v17 = vld [vmem:[%s0 + $0x30] sm:$0xff]
  %v18 = vld [vmem:[%s0 + $0x38] sm:$0xff]
  %v19 = vld [vmem:[%s1] sm:$0xff]
  %v20 = vld [vmem:[%s1 + $0x8] sm:$0xff]
  %v21 = vld [vmem:[%s1 + $0x10] sm:$0xff]
  %v22 = vld [vmem:[%s1 + $0x18] sm:$0xff]
  %v23 = vld [vmem:[%s1 + $0x20] sm:$0xff]
  %v24 = vld [vmem:[%s1 + $0x28] sm:$0xff]
  %v25 = vld [vmem:[%s1 + $0x30] sm:$0xff]
  %v26 = vld [vmem:[%s1 + $0x38] sm:$0xff]
  %v27 = vld [vmem:[%s1 + $0x40] sm:$0xff]
  %v28 = vld [vmem:[%s1 + $0x48] sm:$0xff]
  %v29 = vld [vmem:[%s1 + $0x50] sm:$0xff]
  %v30 = vld [vmem:[%s1 + $0x58] sm:$0xff]
  %v31 = vld [vmem:[%s1 + $0x60] sm:$0xff]
  %v32 = vld [vmem:[%s1 + $0x68] sm:$0xff]
  %v33 = vld [vmem:[%s1 + $0x70] sm:$0xff]
  %v34 = vld [vmem:[%s1 + $0x78] sm:$0xff]
  %35 = vmatprep.subr.mxu0 0.0
  %36 = vmatpush1.msra.mxu0 %v19
  %37 = vmatprep.subr.mxu0 0.0
  %38 = vmatpush1.msra.mxu0 %v20
  %39 = vmatprep.subr.mxu0 0.0
  %40 = vmatpush1.msra.mxu0 %v21
  %41 = vmatprep.subr.mxu0 0.0
  %42 = vmatpush1.msra.mxu0 %v22
  %43 = vmatprep.subr.mxu0 0.0
  %44 = vmatpush1.msra.mxu0 %v23
  %45 = vmatprep.subr.mxu0 0.0
  %46 = vmatpush1.msra.mxu0 %v24
  %47 = vmatprep.subr.mxu0 0.0
  %48 = vmatpush1.msra.mxu0 %v25
  %49 = vmatprep.subr.mxu0 0.0
  %50 = vmatpush1.msra.mxu0 %v26
  %51 = vmatprep.subr.mxu0 0.0
  %52 = vmatpush1.msra.mxu0 %v27
  %53 = vmatprep.subr.mxu0 0.0
  %54 = vmatpush1.msra.mxu0 %v28
  %55 = vmatprep.subr.mxu0 0.0
  %56 = vmatpush1.msra.mxu0 %v29
  %57 = vmatprep.subr.mxu0 0.0
  %58 = vmatpush1.msra.mxu0 %v30
  %59 = vmatprep.subr.mxu0 0.0
  %60 = vmatpush1.msra.mxu0 %v31
  %61 = vmatprep.subr.mxu0 0.0
  %62 = vmatpush1.msra.mxu0 %v32
  %63 = vmatprep.subr.mxu0 0.0
  %64 = vmatpush1.msra.mxu0 %v33
  %65 = vmatprep.subr.mxu0 0.0
  %66 = vmatpush1.msra.mxu0 %v34
  %67 = vmatprep.subr.mxu0 0.0
  %68 = vmatpush1.msra.mxu0 0.0
  %69 = vmatprep.subr.mxu0 0.0
  %70 = vmatpush1.msra.mxu0 0.0
  %71 = vmatprep.subr.mxu0 0.0
  %72 = vmatpush1.msra.mxu0 0.0
  %73 = vmatprep.subr.mxu0 0.0
  %74 = vmatpush1.msra.mxu0 0.0
  %75 = vmatprep.subr.mxu0 0.0
  %76 = vmatpush1.msra.mxu0 0.0
  %77 = vmatprep.subr.mxu0 0.0
  %78 = vmatpush1.msra.mxu0 0.0
  %79 = vmatprep.subr.mxu0 0.0
  %80 = vmatpush1.msra.mxu0 0.0
  %81 = vmatprep.subr.mxu0 0.0
  %82 = vmatpush1.msra.mxu0 0.0
  %83 = vmatprep.subr.mxu0 0.0
  %84 = vmatpush1.msra.mxu0 0.0
  %85 = vmatprep.subr.mxu0 0.0
  %86 = vmatpush1.msra.mxu0 0.0
  %87 = vmatprep.subr.mxu0 0.0
  %88 = vmatpush1.msra.mxu0 0.0
  %89 = vmatprep.subr.mxu0 0.0
  %90 = vmatpush1.msra.mxu0 0.0
  %91 = vmatprep.subr.mxu0 0.0
  %92 = vmatpush1.msra.mxu0 0.0
  %93 = vmatprep.subr.mxu0 0.0
  %94 = vmatpush1.msra.mxu0 0.0
  %95 = vmatprep.subr.mxu0 0.0
  %96 = vmatpush1.msra.mxu0 0.0
  %97 = vmatprep.subr.mxu0 0.0
  %98 = vmatpush1.msra.mxu0 0.0
  %99 = vmatprep.mubr.f32.mxu0 0.0
  %100 = vmatmul.mubr.f32.gmra.mrb[0].mxu0 %v11
  %v101 = vpop.f32.mrb[0].mxu0
  %v102 = vadd.f32 0.0, %v101
  %v103 = vpop.f32.mrb[0].mxu0
  %104 = vmatprep.mubr.f32.mxu0 0.0
  %105 = vmatmul.mubr.f32.gmra.mrb[0].mxu0 %v12
  %v106 = vpop.f32.mrb[0].mxu0
  %v107 = vadd.f32 0.0, %v106
  %v108 = vpop.f32.mrb[0].mxu0
  %109 = vmatprep.mubr.f32.mxu0 0.0
  %110 = vmatmul.mubr.f32.gmra.mrb[0].mxu0 %v13
  %v111 = vpop.f32.mrb[0].mxu0
  %v112 = vadd.f32 0.0, %v111
  %v113 = vpop.f32.mrb[0].mxu0
  %114 = vmatprep.mubr.f32.mxu0 0.0
  %115 = vmatmul.mubr.f32.gmra.mrb[0].mxu0 %v14
  %v116 = vpop.f32.mrb[0].mxu0
  %v117 = vadd.f32 0.0, %v116
  %v118 = vpop.f32.mrb[0].mxu0
  %119 = vmatprep.mubr.f32.mxu0 0.0
  %120 = vmatmul.mubr.f32.gmra.mrb[0].mxu0 %v15
  %v121 = vpop.f32.mrb[0].mxu0
  %v122 = vadd.f32 0.0, %v121
  %v123 = vpop.f32.mrb[0].mxu0
  %124 = vmatprep.mubr.f32.mxu0 0.0
  %125 = vmatmul.mubr.f32.gmra.mrb[0].mxu0 %v16
  %v126 = vpop.f32.mrb[0].mxu0
  %v127 = vadd.f32 0.0, %v126
  %v128 = vpop.f32.mrb[0].mxu0
  %129 = vmatprep.mubr.f32.mxu0 0.0
  %130 = vmatmul.mubr.f32.gmra.mrb[0].mxu0 %v17
  %v131 = vpop.f32.mrb[0].mxu0
  %v132 = vadd.f32 0.0, %v131
  %v133 = vpop.f32.mrb[0].mxu0
  %134 = vmatprep.mubr.f32.mxu0 0.0
  %135 = vmatmul.mubr.f32.gmra.mrb[0].mxu0 %v18
  %v136 = vpop.f32.mrb[0].mxu0
  %v137 = vadd.f32 0.0, %v136
  %v138 = vpop.f32.mrb[0].mxu0
  %139 = vdwg.mxu0
  %v140 = vld [vmem:[%s1 + $0xc0] sm:$0x1]
  %v141 = vlaneseq
  %v142 = vshrl.u32 %v141, 7
  %v143 = vsub.s32 0, %v142
  %v144 = vrot.slane %v140, %v143
  %v145 = vadd.f32 %v102, %v144
  %v146 = vsub.f32 0.0, %v145
  %v147 = vmul.f32 %v146, 1.442695
  %v148 = vpow.pop %v147
  %v149 = vadd.f32 %v148, 1.0
  %v150 = vrcp.pop %v149
  %v151 = vmul.f32 1.0, %v150
  %v152 = vmul.f32 %v145, %v151
  %v153 = vld [vmem:[%s1 + $0x80] sm:$0xff]
  %v154 = vld [vmem:[%s1 + $0x88] sm:$0xff]
  %v155 = vld [vmem:[%s1 + $0x90] sm:$0xff]
  %v156 = vld [vmem:[%s1 + $0x98] sm:$0xff]
  %vm157 = vcmask 261120
  %v159 = vsel %vm157, %v152, 0
  %161 = vmatprep.subr.mxu0 0.0
  %162 = vmatpush1.msra.mxu0 %v153
  %163 = vmatprep.subr.mxu0 0.0
  %164 = vmatpush1.msra.mxu0 %v154
  %165 = vmatprep.subr.mxu0 0.0
  %166 = vmatpush1.msra.mxu0 %v155
  %167 = vmatprep.subr.mxu0 0.0
  %168 = vmatpush1.msra.mxu0 %v156
  %169 = vmatprep.subr.mxu0 0.0
  %170 = vmatpush1.msra.mxu0 0.0
  %171 = vmatprep.subr.mxu0 0.0
  %172 = vmatpush1.msra.mxu0 0.0
  %173 = vmatprep.subr.mxu0 0.0
  %174 = vmatpush1.msra.mxu0 0.0
  %175 = vmatprep.subr.mxu0 0.0
  %176 = vmatpush1.msra.mxu0 0.0
  %177 = vmatprep.subr.mxu0 0.0
  %178 = vmatpush1.msra.mxu0 0.0
  %179 = vmatprep.subr.mxu0 0.0
  %180 = vmatpush1.msra.mxu0 0.0
  %181 = vmatprep.subr.mxu0 0.0
  %182 = vmatpush1.msra.mxu0 0.0
  %183 = vmatprep.subr.mxu0 0.0
  %184 = vmatpush1.msra.mxu0 0.0
  %185 = vmatprep.subr.mxu0 0.0
  %186 = vmatpush1.msra.mxu0 0.0
  %187 = vmatprep.subr.mxu0 0.0
  %188 = vmatpush1.msra.mxu0 0.0
  %189 = vmatprep.subr.mxu0 0.0
  %190 = vmatpush1.msra.mxu0 0.0
  %191 = vmatprep.subr.mxu0 0.0
  %192 = vmatpush1.msra.mxu0 0.0
  %193 = vmatprep.subr.mxu0 0.0
  %194 = vmatpush1.msra.mxu0 0.0
  %195 = vmatprep.subr.mxu0 0.0
  %196 = vmatpush1.msra.mxu0 0.0
  %197 = vmatprep.subr.mxu0 0.0
  %198 = vmatpush1.msra.mxu0 0.0
  %199 = vmatprep.subr.mxu0 0.0
  %200 = vmatpush1.msra.mxu0 0.0
  %201 = vmatprep.subr.mxu0 0.0
  %202 = vmatpush1.msra.mxu0 0.0
  %203 = vmatprep.subr.mxu0 0.0
  %204 = vmatpush1.msra.mxu0 0.0
  %205 = vmatprep.subr.mxu0 0.0
  %206 = vmatpush1.msra.mxu0 0.0
  %207 = vmatprep.subr.mxu0 0.0
  %208 = vmatpush1.msra.mxu0 0.0
  %209 = vmatprep.subr.mxu0 0.0
  %210 = vmatpush1.msra.mxu0 0.0
  %211 = vmatprep.subr.mxu0 0.0
  %212 = vmatpush1.msra.mxu0 0.0
  %213 = vmatprep.subr.mxu0 0.0
  %214 = vmatpush1.msra.mxu0 0.0
  %215 = vmatprep.subr.mxu0 0.0
  %216 = vmatpush1.msra.mxu0 0.0
  %217 = vmatprep.subr.mxu0 0.0
  %218 = vmatpush1.msra.mxu0 0.0
  %219 = vmatprep.subr.mxu0 0.0
  %220 = vmatpush1.msra.mxu0 0.0
  %221 = vmatprep.subr.mxu0 0.0
  %222 = vmatpush1.msra.mxu0 0.0
  %223 = vmatprep.subr.mxu0 0.0
  %224 = vmatpush1.msra.mxu0 0.0
  %225 = vmatprep.mubr.f32.mxu0 0.0
  %226 = vmatmul.mubr.f32.gmra.mrb[0].mxu0 %v159
  %v227 = vpop.f32.mrb[0].mxu0
  %v228 = vadd.f32 0.0, %v227
  %v229 = vpop.f32.mrb[0].mxu0
  %230 = vdwg.mxu0
  %vm231 = vcmask 785920
  %v232 = vsel %vm231, %v102, 0.0
  %v233 = vrot.slane %v232, 4
  %v234 = vadd.f32 %v232, %v233
  %v235 = vrot.slane %v234, 2
  %v236 = vadd.f32 %v234, %v235
  %v237 = vrot.slane %v236, 1
  %v238 = vadd.f32 %v236, %v237
  %v239 = vsel %vm231, %v107, 0.0
  %v240 = vrot.slane %v239, 4
  %v241 = vadd.f32 %v239, %v240
  %v242 = vrot.slane %v241, 2
  %v243 = vadd.f32 %v241, %v242
  %v244 = vrot.slane %v243, 1
  %v245 = vadd.f32 %v243, %v244
  %v246 = vsel %vm231, %v112, 0.0
  %v247 = vrot.slane %v246, 4
  %v248 = vadd.f32 %v246, %v247
  %v249 = vrot.slane %v248, 2
  %v250 = vadd.f32 %v248, %v249
  %v251 = vrot.slane %v250, 1
  %v252 = vadd.f32 %v250, %v251
  %v253 = vsel %vm231, %v117, 0.0
  %v254 = vrot.slane %v253, 4
  %v255 = vadd.f32 %v253, %v254
  %v256 = vrot.slane %v255, 2
  %v257 = vadd.f32 %v255, %v256
  %v258 = vrot.slane %v257, 1
  %v259 = vadd.f32 %v257, %v258
  %v260 = vsel %vm231, %v122, 0.0
  %v261 = vrot.slane %v260, 4
  %v262 = vadd.f32 %v260, %v261
  %v263 = vrot.slane %v262, 2
  %v264 = vadd.f32 %v262, %v263
  %v265 = vrot.slane %v264, 1
  %v266 = vadd.f32 %v264, %v265
  %v267 = vsel %vm231, %v127, 0.0
  %v268 = vrot.slane %v267, 4
  %v269 = vadd.f32 %v267, %v268
  %v270 = vrot.slane %v269, 2
  %v271 = vadd.f32 %v269, %v270
  %v272 = vrot.slane %v271, 1
  %v273 = vadd.f32 %v271, %v272
  %v274 = vsel %vm231, %v132, 0.0
  %v275 = vrot.slane %v274, 4
  %v276 = vadd.f32 %v274, %v275
  %v277 = vrot.slane %v276, 2
  %v278 = vadd.f32 %v276, %v277
  %v279 = vrot.slane %v278, 1
  %v280 = vadd.f32 %v278, %v279
  %v281 = vsel %vm231, %v137, 0.0
  %v282 = vrot.slane %v281, 4
  %v283 = vadd.f32 %v281, %v282
  %v284 = vrot.slane %v283, 2
  %v285 = vadd.f32 %v283, %v284
  %v286 = vrot.slane %v285, 1
  %v287 = vadd.f32 %v285, %v286
  %v288 = vrcp.pop 8.0
  %v289 = vmul.f32 %v238, %v288
  %v290 = vmul.f32 %v245, %v288
  %v291 = vmul.f32 %v252, %v288
  %v292 = vmul.f32 %v259, %v288
  %v293 = vmul.f32 %v266, %v288
  %v294 = vmul.f32 %v273, %v288
  %v295 = vmul.f32 %v280, %v288
  %v296 = vmul.f32 %v287, %v288
  %v297 = vadd.f32 %v289, %v293
  %v298 = vadd.f32 %v290, %v294
  %v299 = vadd.f32 %v291, %v295
  %v300 = vadd.f32 %v292, %v296
  %v302 = vrot.slane %v102, 1
  %v303 = vrot.slane %v102, 2
  %v304 = vrot.slane %v102, 3
  %305 = vrot.lane.b32.xlu0 %v102, 32
  %v306 = vpop.permute.xlu0 %305
  %307 = vrot.lane.b32.xlu0 %v302, 32
  %v308 = vpop.permute.xlu0 %307
  %309 = vrot.lane.b32.xlu0 %v303, 32
  %v310 = vpop.permute.xlu0 %309
  %311 = vrot.lane.b32.xlu0 %v304, 32
  %v312 = vpop.permute.xlu0 %311
  %v317 = vadd.f32 %v297, %v306
  %v318 = vadd.f32 %v298, %v308
  %v319 = vadd.f32 %v299, %v310
  %v320 = vadd.f32 %v300, %v312
  %v322 = vrot.slane %v228, 1
  %v323 = vrot.slane %v228, 2
  %v324 = vrot.slane %v228, 3
  %325 = vrot.lane.b32.xlu0 %v228, 64
  %v326 = vpop.permute.xlu0 %325
  %327 = vrot.lane.b32.xlu0 %v322, 64
  %v328 = vpop.permute.xlu0 %327
  %329 = vrot.lane.b32.xlu0 %v323, 64
  %v330 = vpop.permute.xlu0 %329
  %331 = vrot.lane.b32.xlu0 %v324, 64
  %v332 = vpop.permute.xlu0 %331
  %v337 = vadd.f32 %v317, %v326
  %v338 = vadd.f32 %v318, %v328
  %v339 = vadd.f32 %v319, %v330
  %v340 = vadd.f32 %v320, %v332
  %v341 = vld [vmem:[%s1 + $0xc1] sm:$0x1]
  %v342 = vlaneseq
  %v343 = vshrl.u32 %v342, 7
  %v344 = vsub.s32 0, %v343
  %v345 = vrot.slane %v341, %v344
  %347 = vrot.lane.b32.xlu0 %v345, 64
  %v348 = vpop.permute.xlu0 %347
  %v350 = vadd.f32 %v337, %v348
  %v351 = vadd.f32 %v338, %v348
  %v352 = vadd.f32 %v339, %v348
  %v353 = vadd.f32 %v340, %v348
  %v354 = vld [vmem:[%s1 + $0xa0] sm:$0xff]
  %v355 = vld [vmem:[%s1 + $0xa8] sm:$0xff]
  %v356 = vld [vmem:[%s1 + $0xb0] sm:$0xff]
  %v357 = vld [vmem:[%s1 + $0xb8] sm:$0xff]
  %v358 = vld [vmem:[%s1 + $0xc2] sm:$0x1]
  %v359 = vlaneseq
  %v360 = vshrl.u32 %v359, 7
  %v361 = vsub.s32 0, %v360
  %v362 = vrot.slane %v358, %v361
  %v367 = vrot.slane %v351, 7
  %vm368 = vcmask 1041409
  %v369 = vsel %vm368, %v367, %v350
  %v370 = vrot.slane %v352, 6
  %vm371 = vcmask 1042434
  %v372 = vsel %vm371, %v370, %v369
  %v373 = vrot.slane %v353, 5
  %vm374 = vcmask 1043459
  %v375 = vsel %vm374, %v373, %v372
  %376 = vrot.lane.b32.xlu0 %v375, 64
  %v377 = vpop.permute.xlu0 %376
  %v378 = vsel %vm157, %v377, 0
  %380 = vmatprep.subr.mxu0 0.0
  %381 = vmatpush1.msra.mxu0 %v354
  %382 = vmatprep.subr.mxu0 0.0
  %383 = vmatpush1.msra.mxu0 %v355
  %384 = vmatprep.subr.mxu0 0.0
  %385 = vmatpush1.msra.mxu0 %v356
  %386 = vmatprep.subr.mxu0 0.0
  %387 = vmatpush1.msra.mxu0 %v357
  %388 = vmatprep.subr.mxu0 0.0
  %389 = vmatpush1.msra.mxu0 0.0
  %390 = vmatprep.subr.mxu0 0.0
  %391 = vmatpush1.msra.mxu0 0.0
  %392 = vmatprep.subr.mxu0 0.0
  %393 = vmatpush1.msra.mxu0 0.0
  %394 = vmatprep.subr.mxu0 0.0
  %395 = vmatpush1.msra.mxu0 0.0
  %396 = vmatprep.subr.mxu0 0.0
  %397 = vmatpush1.msra.mxu0 0.0
  %398 = vmatprep.subr.mxu0 0.0
  %399 = vmatpush1.msra.mxu0 0.0
  %400 = vmatprep.subr.mxu0 0.0
  %401 = vmatpush1.msra.mxu0 0.0
  %402 = vmatprep.subr.mxu0 0.0
  %403 = vmatpush1.msra.mxu0 0.0
  %404 = vmatprep.subr.mxu0 0.0
  %405 = vmatpush1.msra.mxu0 0.0
  %406 = vmatprep.subr.mxu0 0.0
  %407 = vmatpush1.msra.mxu0 0.0
  %408 = vmatprep.subr.mxu0 0.0
  %409 = vmatpush1.msra.mxu0 0.0
  %410 = vmatprep.subr.mxu0 0.0
  %411 = vmatpush1.msra.mxu0 0.0
  %412 = vmatprep.subr.mxu0 0.0
  %413 = vmatpush1.msra.mxu0 0.0
  %414 = vmatprep.subr.mxu0 0.0
  %415 = vmatpush1.msra.mxu0 0.0
  %416 = vmatprep.subr.mxu0 0.0
  %417 = vmatpush1.msra.mxu0 0.0
  %418 = vmatprep.subr.mxu0 0.0
  %419 = vmatpush1.msra.mxu0 0.0
  %420 = vmatprep.subr.mxu0 0.0
  %421 = vmatpush1.msra.mxu0 0.0
  %422 = vmatprep.subr.mxu0 0.0
  %423 = vmatpush1.msra.mxu0 0.0
  %424 = vmatprep.subr.mxu0 0.0
  %425 = vmatpush1.msra.mxu0 0.0
  %426 = vmatprep.subr.mxu0 0.0
  %427 = vmatpush1.msra.mxu0 0.0
  %428 = vmatprep.subr.mxu0 0.0
  %429 = vmatpush1.msra.mxu0 0.0
  %430 = vmatprep.subr.mxu0 0.0
  %431 = vmatpush1.msra.mxu0 0.0
  %432 = vmatprep.subr.mxu0 0.0
  %433 = vmatpush1.msra.mxu0 0.0
  %434 = vmatprep.subr.mxu0 0.0
  %435 = vmatpush1.msra.mxu0 0.0
  %436 = vmatprep.subr.mxu0 0.0
  %437 = vmatpush1.msra.mxu0 0.0
  %438 = vmatprep.subr.mxu0 0.0
  %439 = vmatpush1.msra.mxu0 0.0
  %440 = vmatprep.subr.mxu0 0.0
  %441 = vmatpush1.msra.mxu0 0.0
  %442 = vmatprep.subr.mxu0 0.0
  %443 = vmatpush1.msra.mxu0 0.0
  %444 = vmatprep.mubr.f32.mxu0 0.0
  %445 = vmatmul.mubr.f32.gmra.mrb[0].mxu0 %v378
  %v446 = vpop.f32.mrb[0].mxu0
  %v447 = vadd.f32 %v362, %v446
  %v448 = vpop.f32.mrb[0].mxu0
  %449 = vdwg.mxu0
  %v450 = vsub.f32 0.0, %v447
  %v451 = vmul.f32 %v450, 1.442695
  %v452 = vpow.pop %v451
  %v453 = vadd.f32 %v452, 1.0
  %v454 = vrcp.pop %v453
  %v455 = vmul.f32 1.0, %v454
  %v456 = vmul.f32 %v447, %v455
  %v457 = vld [vmem:[%s1 + $0xc3] sm:$0x1]
  %v458 = vlaneseq
  %v459 = vshrl.u32 %v458, 7
  %v460 = vsub.s32 0, %v459
  %v461 = vrot.slane %v457, %v460
  %v462 = vmul.f32 %v456, %v461
  %vm463 = vcmask 519168
  %v464 = vsel %vm463, %v462, 0.0
  %465 = vadd.xlane.f32.xlu0 %v464
  %v466 = vpop.xlane.xlu0 %465
  %v467 = vld [vmem:[%s1 + $0xc4] sm:$0x1]
  %v468 = vlaneseq
  %v469 = vshrl.u32 %v468, 7
  %v470 = vsub.s32 0, %v469
  %v471 = vrot.slane %v467, %v470
  %v472 = vadd.f32 %v466, %v471
  %v473 = vsub.f32 0.0, %v472
  %v474 = vmul.f32 %v473, 1.442695
  %v475 = vpow.pop %v474
  %v476 = vadd.f32 %v475, 1.0
  %v477 = vrcp.pop %v476
  %v478 = vmul.f32 1.0, %v477
  %v479 = vld [vmem:[%s1 + $0xc5] sm:$0x1]
  %v480 = vlaneseq
  %v481 = vshrl.u32 %v480, 7
  %v482 = vsub.s32 0, %v481
  %v483 = vrot.slane %v479, %v482
  %v484 = vmul.f32 %v11, %v483
  %v485 = vmul.f32 %v12, %v483
  %v486 = vmul.f32 %v13, %v483
  %v487 = vmul.f32 %v14, %v483
  %489 = vrot.lane.b32.xlu0 %v483, 120
  %v490 = vpop.permute.xlu0 %489
  %v492 = vadd.f32 %v484, %v490
  %v493 = vadd.f32 %v485, %v490
  %v494 = vadd.f32 %v486, %v490
  %v495 = vadd.f32 %v487, %v490
  %v496 = vmul.f32 %v15, %v490
  %v497 = vmul.f32 %v16, %v490
  %v498 = vmul.f32 %v17, %v490
  %v499 = vmul.f32 %v18, %v490
  %500 = vrot.lane.b32.xlu0 %v483, 112
  %v501 = vpop.permute.xlu0 %500
  %v503 = vadd.f32 %v496, %v501
  %v504 = vadd.f32 %v497, %v501
  %v505 = vadd.f32 %v498, %v501
  %v506 = vadd.f32 %v499, %v501
  %v509 = vunpack.c.l.s4 1966171168
  %v510 = vunpack.c.0.s8 %v509
  %v511 = vlaneseq
  %v512 = vshrl.u32 %v511, 7
  %v513 = vsub.s32 %v510, %v512
  %v514 = vrot.slane %v478, %v513
  %v515 = vcombine.high %v514, %v514
  %v517 = vunpack.c.l.s4 1966171168
  %v518 = vunpack.c.0.s8 %v517
  %v519 = vlaneseq
  %v520 = vshrl.u32 %v519, 7
  %v521 = vsub.s32 %v518, %v520
  %v522 = vrot.slane %v514, %v521
  %v524 = vunpack.c.l.s4 1966171168
  %v525 = vunpack.c.0.s8 %v524
  %v526 = vlaneseq
  %v527 = vshrl.u32 %v526, 7
  %v528 = vsub.s32 %v525, %v527
  %v529 = vrot.slane %v515, %v528
  %v530 = vcombine.high %v522, %v522
  %v531 = vcombine.high %v529, %v529
  %v532 = vlaneseq
  %v533 = vshrl.u32 %v532, 7
  %v534 = vsub.s32 0, %v533
  %v535 = vrot.slane %v522, %v534
  %v536 = vlaneseq
  %v537 = vshrl.u32 %v536, 7
  %v538 = vsub.s32 0, %v537
  %v539 = vrot.slane %v529, %v538
  %v540 = vlaneseq
  %v541 = vshrl.u32 %v540, 7
  %v542 = vsub.s32 0, %v541
  %v543 = vrot.slane %v530, %v542
  %v544 = vlaneseq
  %v545 = vshrl.u32 %v544, 7
  %v546 = vsub.s32 0, %v545
  %v547 = vrot.slane %v531, %v546
  %548 = vset.pattern.permute.xlu0 0
  %549 = vperm.xlu0 %548, %v535
  %v550 = vpop.permute.xlu0 %549
  %552 = vset.pattern.permute.xlu0 0
  %553 = vperm.xlu0 %552, %v539
  %v554 = vpop.permute.xlu0 %553
  %556 = vset.pattern.permute.xlu0 0
  %557 = vperm.xlu0 %556, %v543
  %v558 = vpop.permute.xlu0 %557
  %560 = vset.pattern.permute.xlu0 0
  %561 = vperm.xlu0 %560, %v547
  %v562 = vpop.permute.xlu0 %561
  %568 = vrot.lane.b32.xlu0 %v503, 120
  %v569 = vpop.permute.xlu0 %568
  %570 = vrot.lane.b32.xlu0 %v504, 120
  %v571 = vpop.permute.xlu0 %570
  %572 = vrot.lane.b32.xlu0 %v505, 120
  %v573 = vpop.permute.xlu0 %572
  %574 = vrot.lane.b32.xlu0 %v506, 120
  %v575 = vpop.permute.xlu0 %574
  %v580 = vsub.f32 %v492, %v569
  %v581 = vsub.f32 %v493, %v571
  %v582 = vsub.f32 %v494, %v573
  %v583 = vsub.f32 %v495, %v575
  %v584 = vmul.f32 %v550, %v580
  %v585 = vmul.f32 %v554, %v581
  %v586 = vmul.f32 %v558, %v582
  %v587 = vmul.f32 %v562, %v583
  %592 = vrot.lane.b32.xlu0 %v584, 8
  %v593 = vpop.permute.xlu0 %592
  %594 = vrot.lane.b32.xlu0 %v585, 8
  %v595 = vpop.permute.xlu0 %594
  %596 = vrot.lane.b32.xlu0 %v586, 8
  %v597 = vpop.permute.xlu0 %596
  %598 = vrot.lane.b32.xlu0 %v587, 8
  %v599 = vpop.permute.xlu0 %598
  %v604 = vadd.f32 %v503, %v593
  %v605 = vadd.f32 %v504, %v595
  %v606 = vadd.f32 %v505, %v597
  %v607 = vadd.f32 %v506, %v599
  %610 = vrot.lane.b32.xlu0 %v604, 120
  %v611 = vpop.permute.xlu0 %610
  %612 = vrot.lane.b32.xlu0 %v605, 120
  %v613 = vpop.permute.xlu0 %612
  %vm616 = vcmask 64512
  %617 = vst.msk [vmem:[%s2] sm:$0xff] %vm616, %v611
  %618 = vst.msk [vmem:[%s2 + $0x8] sm:$0xff] %vm616, %v613
  %vm619 = vcmask 130112
  %620 = vst.msk [vmem:[%s2] sm:$0xff] %vm619, %v606
  %621 = vst.msk [vmem:[%s2 + $0x8] sm:$0xff] %vm619, %v607
  %624 = vrot.lane.b32.xlu0 %v492, 16
  %v625 = vpop.permute.xlu0 %624
  %626 = vrot.lane.b32.xlu0 %v493, 16
  %v627 = vpop.permute.xlu0 %626
  %vm630 = vcmask 195712
  %631 = vst.msk [vmem:[%s2] sm:$0xff] %vm630, %v625
  %632 = vst.msk [vmem:[%s2 + $0x8] sm:$0xff] %vm630, %v627
  %635 = vrot.lane.b32.xlu0 %v494, 24
  %v636 = vpop.permute.xlu0 %635
  %637 = vrot.lane.b32.xlu0 %v495, 24
  %v638 = vpop.permute.xlu0 %637
  %vm641 = vcmask 261312
  %642 = vst.msk [vmem:[%s2] sm:$0xff] %vm641, %v636
  %643 = vst.msk [vmem:[%s2 + $0x8] sm:$0xff] %vm641, %v638
  %644 = vrot.lane.b32.xlu0 %v503, 24
  %v645 = vpop.permute.xlu0 %644
  %646 = vrot.lane.b32.xlu0 %v504, 24
  %v647 = vpop.permute.xlu0 %646
  %vm650 = vcmask 326912
  %651 = vst.msk [vmem:[%s2] sm:$0xff] %vm650, %v645
  %652 = vst.msk [vmem:[%s2 + $0x8] sm:$0xff] %vm650, %v647
  %653 = vrot.lane.b32.xlu0 %v505, 32
  %v654 = vpop.permute.xlu0 %653
  %655 = vrot.lane.b32.xlu0 %v506, 32
  %v656 = vpop.permute.xlu0 %655
  %vm659 = vcmask 392512
  %660 = vst.msk [vmem:[%s2] sm:$0xff] %vm659, %v654
  %661 = vst.msk [vmem:[%s2 + $0x8] sm:$0xff] %vm659, %v656
  // Predicated region
  $region10: #{mixer_forward.1} parent=0 // pred_check
    _
  $region11: #{mixer_forward.1} parent=0 // pred_check_branch
    %663 = sbr.rel (0) target = $region13
  $region12: #{mixer_forward.1} parent=0 // pred_region
    _
  $region13: #{mixer_forward.1} parent=0 // pred_fallthru
    _
  // Predicated region
  $region14: #{mixer_forward.1} parent=0 // pred_check
    _
  $region15: #{mixer_forward.1} parent=0 // pred_check_branch
    %665 = sbr.rel (0) target = $region17
  $region16: #{mixer_forward.1} parent=0 // pred_region
    _
  $region17: #{mixer_forward.1} parent=0 // pred_fallthru
    _

</llo_original>
